<compile_context>
chip_gen: v7x
topology: tpu7x:2x2x1
jax: 0.10.0
libtpu: 0.0.40
codegen_flags: <defaults>
</compile_context>

<pallas_src>
import functools

import jax
import jax.numpy as jnp
from jax.experimental import pallas as pl
from jax.experimental.pallas import tpu as pltpu


def _cdiv(a, b):
    return -(-a // b)


def _round_up(a, b):
    return _cdiv(a, b) * b


@functools.lru_cache(maxsize=None)
def _vmem_capacity_bytes():
    """Physical per-core VMEM; conservative 64 MiB (v7x) fallback."""
    try:
        cap = int(pltpu.get_tpu_info().vmem_capacity_bytes)
        if cap > 0:
            return cap
    except Exception:
        pass
    return 64 * 1024 * 1024


@functools.lru_cache(maxsize=None)
def _num_tensorcores():
    """Best-effort TensorCores-per-chip (v7x: 2).  Safe default is 1."""
    try:
        info = pltpu.get_tpu_info()
        for attr in ("num_cores", "core_count", "tensorcore_count",
                     "num_tensorcores"):
            v = getattr(info, attr, None)
            if v:
                return int(v)
    except Exception:
        pass
    try:
        v = getattr(jax.devices()[0], "num_cores", None)
        if v:
            return int(v)
    except Exception:
        pass
    return 1


def _pick_lane_tile(hw, max_cols):
    """Largest 128-multiple spatial (lane) tile not exceeding max_cols."""
    max_cols = max(128, (max_cols // 128) * 128)
    return int(min(_round_up(hw, 128), max_cols))


# ------------------------------ kernels -------------------------------------


def _excite(pooled_col, w1_ref, w2_ref):
    """gate = sigmoid(W2 @ relu(W1 @ pooled)); column-oriented (C,1)->(C,1)."""
    c = pooled_col.shape[0]
    # Broadcast the pooled column to 128 lanes so both tiny matmuls are
    # lane-dense MXU ops instead of degenerate 1-lane ones.
    pooled_b = jnp.broadcast_to(pooled_col, (c, 128))
    hidden = jnp.maximum(
        jnp.dot(w1_ref[...].astype(jnp.float32), pooled_b,
                preferred_element_type=jnp.float32), 0.0)          # (Crp, 128)
    pre = jnp.dot(w2_ref[...].astype(jnp.float32), hidden,
                  preferred_element_type=jnp.float32)              # (C, 128)
    # exp + approx reciprocal both sit in the EUP slot -> off the VALU path.
    return pl.reciprocal(1.0 + jnp.exp(-pre[:, 0:1]), approx=True)  # (C, 1)


def _se_fused_kernel(x_ref, w1_ref, w2_ref, o_ref, *, inv_hw):
    """Whole-sample fast path: pool + excite + scale; 1 read + 1 write of x."""
    pooled = jnp.sum(x_ref[0].astype(jnp.float32), axis=-1,
                     keepdims=True) * inv_hw                        # (C, 1)
    gate = _excite(pooled, w1_ref, w2_ref)
    # Re-read x_ref instead of keeping the whole block live across the
    # excitation (less vreg/VMEM pressure for large fused blocks).
    o_ref[0] = x_ref[0] * gate.astype(o_ref.dtype)


def _se_pool_gate_kernel(x_ref, w1_ref, w2_ref, o_ref, *,
                         inv_hw, hw, t_hw, need_mask):
    """Tiled pass 1: f32 channel sums over spatial tiles; at the last tile the
    resident accumulator is turned into the sigmoid gate in place."""
    t = pl.program_id(1)

    @pl.when(t == 0)
    def _():
        o_ref[...] = jnp.zeros_like(o_ref)

    xs = x_ref[0].astype(jnp.float32)                               # (C, Tp)
    if need_mask:
        # Last spatial tile may extend past H*W; OOB lanes hold garbage.
        lane = jax.lax.broadcasted_iota(jnp.int32, xs.shape, 1)
        xs = jnp.where(t * t_hw + lane < hw, xs, 0.0)
    o_ref[0] = o_ref[0] + jnp.sum(xs, axis=1, keepdims=True)

    @pl.when(t == pl.num_programs(1) - 1)
    def _():
        o_ref[0] = _excite(o_ref[0] * inv_hw, w1_ref, w2_ref)


def _se_scale_kernel(x_ref, g_ref, o_ref):
    """Tiled pass 2: out = x * gate (elementwise; both grid axes parallel)."""
    o_ref[0] = x_ref[0] * g_ref[0].astype(o_ref.dtype)


# ------------------------------ wrapper --------------------------------------


@functools.partial(jax.jit, static_argnames=("spatial_tile", "force_tiled"))
def se_module_pallas(x, w_fc1, w_fc2, *, spatial_tile=None, force_tiled=False):
    """SE block forward.

    Args:
      x:     [N, C, H, W] input (NCHW, as in PyTorch).
      w_fc1: [C // r, C]  fc1 1x1-conv weight (squeezed, no bias).
      w_fc2: [C, C // r]  fc2 1x1-conv weight (squeezed, no bias).
    Returns:
      [N, C, H, W] = x * sigmoid(fc2(relu(fc1(avg_pool(x))))).
    """
    n, c, h, w = x.shape
    cr = w_fc1.shape[0]
    hw = h * w
    dtype = x.dtype
    itemsize = jnp.dtype(dtype).itemsize
    inv_hw = 1.0 / float(hw)

    # Free reshape: channels -> sublanes, spatial -> lanes.  No copy of x.
    x_r = x.reshape(n, c, hw)

    # Tiny weight pad (Cr -> multiple of 8 sublanes; zero pad is exact because
    # relu(0)=0 and the padded fc2 columns are zero).  bf16 storage when x is
    # bf16 halves the double-buffered resident-weight footprint.
    cr_pad = max(8, _round_up(cr, 8))
    w_dtype = jnp.bfloat16 if dtype == jnp.bfloat16 else jnp.float32
    w_item = jnp.dtype(w_dtype).itemsize
    w1p = jnp.zeros((cr_pad, c), w_dtype).at[:cr, :].set(w_fc1.astype(w_dtype))
    w2p = jnp.zeros((c, cr_pad), w_dtype).at[:, :cr].set(w_fc2.astype(w_dtype))
    w_bytes = 2 * cr_pad * c * w_item

    # Generation-aware VMEM budget (128 MiB physical on v5e/v6e, 64 on v7x).
    vmem_limit = int(min(_vmem_capacity_bytes() * 7 // 8, 112 * 1024 * 1024))
    # Budget for the streamed x/out tiles: scoped limit minus double-buffered
    # weights and misc headroom, with a further 25% margin for compiler
    # temporaries (e.g. the f32 cast of a bf16 block inside the pooling sum).
    usable = max(((vmem_limit - 4 * w_bytes - (4 << 20)) * 3) // 4, 2 << 20)

    tc = _num_tensorcores()
    # 2x double-buffered input + 2x output + f32 pooling temp, per sample.
    fused_bytes = c * hw * (4 * itemsize + 4)
    # On multi-core chips (v7x) a grid=(n,) kernel with n < #cores leaves a
    # TensorCore idle; fall back to the tiled path whose scale pass shards the
    # spatial axis across cores.
    use_fused = (not force_tiled) and fused_bytes <= usable and n >= tc

    cp = lambda sem: pltpu.CompilerParams(dimension_semantics=sem,
                                          vmem_limit_bytes=vmem_limit)

    if use_fused:
        out_r = pl.pallas_call(
            functools.partial(_se_fused_kernel, inv_hw=inv_hw),
            out_shape=jax.ShapeDtypeStruct((n, c, hw), dtype),
            grid_spec=pltpu.PrefetchScalarGridSpec(
                num_scalar_prefetch=0,
                grid=(n,),
                in_specs=[
                    pl.BlockSpec((1, c, hw), lambda i: (i, 0, 0)),
                    pl.BlockSpec((cr_pad, c), lambda i: (0, 0)),   # resident
                    pl.BlockSpec((c, cr_pad), lambda i: (0, 0)),   # resident
                ],
                out_specs=pl.BlockSpec((1, c, hw), lambda i: (i, 0, 0)),
            ),
            compiler_params=cp(("parallel",)),
        )(x_r, w1p, w2p)
    else:
        if spatial_tile is not None:
            t_pool = t_scale = min(_round_up(hw, 128),
                                   max(128, _round_up(spatial_tile, 128)))
        else:
            # Pool streams only x (accumulator resident) -> bigger tile than
            # the scale pass, which double-buffers both x and out.
            t_pool = _pick_lane_tile(hw, usable // (c * (2 * itemsize + 4)))
            t_scale = _pick_lane_tile(hw, usable // (c * (4 * itemsize)))
        n_pool = _cdiv(hw, t_pool)
        n_scale = _cdiv(hw, t_scale)

        # Pass 1: pooling with the gate computation folded into the last
        # spatial step (no separate excitation kernel / HBM round trip).
        gate = pl.pallas_call(
            functools.partial(_se_pool_gate_kernel, inv_hw=inv_hw, hw=hw,
                              t_hw=t_pool, need_mask=(hw % t_pool != 0)),
            out_shape=jax.ShapeDtypeStruct((n, c, 1), jnp.float32),
            grid_spec=pltpu.PrefetchScalarGridSpec(
                num_scalar_prefetch=0,
                grid=(n, n_pool),
                in_specs=[
                    pl.BlockSpec((1, c, t_pool), lambda i, t: (i, 0, t)),
                    pl.BlockSpec((cr_pad, c), lambda i, t: (0, 0)),
                    pl.BlockSpec((c, cr_pad), lambda i, t: (0, 0)),
                ],
                out_specs=pl.BlockSpec((1, c, 1), lambda i, t: (i, 0, 0)),
            ),
            compiler_params=cp(("parallel", "arbitrary")),
        )(x_r, w1p, w2p)

        # Pass 2: broadcast multiply; both axes parallel so v7x's two cores
        # share the streaming even at batch 1.
        out_r = pl.pallas_call(
            _se_scale_kernel,
            out_shape=jax.ShapeDtypeStruct((n, c, hw), dtype),
            grid_spec=pltpu.PrefetchScalarGridSpec(
                num_scalar_prefetch=0,
                grid=(n, n_scale),
                in_specs=[
                    pl.BlockSpec((1, c, t_scale), lambda i, t: (i, 0, t)),
                    pl.BlockSpec((1, c, 1), lambda i, t: (i, 0, 0)),
                ],
                out_specs=pl.BlockSpec((1, c, t_scale), lambda i, t: (i, 0, t)),
            ),
            compiler_params=cp(("parallel", "parallel")),
        )(x_r, gate)

    # Free reshape back to NCHW.
    return out_r.reshape(n, c, h, w)


# ------------------------------ reference & test ------------------------------


def _se_reference(x, w_fc1, w_fc2):
    pooled = jnp.mean(x.astype(jnp.float32), axis=(2, 3))             # [N, C]
    hidden = jnp.maximum(pooled @ w_fc1.astype(jnp.float32).T, 0.0)   # [N, Cr]
    gate = 1.0 / (1.0 + jnp.exp(-(hidden @ w_fc2.astype(jnp.float32).T)))
    return (x.astype(jnp.float32) * gate[:, :, None, None]).astype(x.dtype)


if __name__ == "__main__":
    key = jax.random.PRNGKey(0)
    kx, k1, k2 = jax.random.split(key, 3)

    n, c, h, w, reduction = 2, 64, 14, 14, 16
    cr = c // reduction

    x = jax.random.normal(kx, (n, c, h, w), jnp.float32)
    w_fc1 = jax.random.normal(k1, (cr, c), jnp.float32) * (c ** -0.5)
    w_fc2 = jax.random.normal(k2, (c, cr), jnp.float32) * (cr ** -0.5)

    # Fast path: whole sample resident in VMEM (1 read + 1 write of x).
    out_fused = jax.block_until_ready(se_module_pallas(x, w_fc1, w_fc2))
    # General path: spatially tiled pool+gate / scale pipeline (forced, with a
    # 128-lane tile so the partial-tile masking is exercised: 196 % 128 != 0).
    out_tiled = jax.block_until_ready(
        se_module_pallas(x, w_fc1, w_fc2, spatial_tile=128, force_tiled=True))

    ref = jax.block_until_ready(_se_reference(x, w_fc1, w_fc2))

    ok = True
    for name, out in (("fused", out_fused), ("tiled", out_tiled)):
        if out.shape != x.shape or out.dtype != x.dtype:
            ok = False
            print(f"{name}: bad shape/dtype {out.shape} {out.dtype}")
            continue
        if not bool(jnp.allclose(out, ref, rtol=5e-3, atol=5e-3)):
            ok = False
            err = float(jnp.max(jnp.abs(out.astype(jnp.float32) -
                                        ref.astype(jnp.float32))))
            print(f"{name}: mismatch, max abs err = {err:.3e}")

    if ok:
        print("KERNEL_OK")
</pallas_src>

<mosaic_0001>
module attributes {stable_mosaic.version = 11 : i64} {
  func.func @_se_fused_kernel(%arg0: i32, %arg1: memref<1x64x196xf32, #tpu.memory_space<vmem>>, %arg2: memref<8x64xf32, #tpu.memory_space<vmem>>, %arg3: memref<64x8xf32, #tpu.memory_space<vmem>>, %arg4: memref<1x64x196xf32, #tpu.memory_space<vmem>>) attributes {dimension_semantics = [#tpu.dimension_semantics<parallel>], iteration_bounds = array<i64: 2>, scalar_prefetch = 0 : i64, scratch_operands = 0 : i64, tpu.core_type = #tpu.core_type<tc>, window_params = [{transform_indices = @transform_0, window_bounds = array<i64: 1, 64, 196>}, {pipeline_mode = #tpu.pipeline_mode<synchronous>, transform_indices = @transform_1, window_bounds = array<i64: 8, 64>}, {pipeline_mode = #tpu.pipeline_mode<synchronous>, transform_indices = @transform_2, window_bounds = array<i64: 64, 8>}, {transform_indices = @transform_3, window_bounds = array<i64: 1, 64, 196>}]} {
    %c0 = arith.constant 0 : index
    %c0_0 = arith.constant 0 : index
    %c0_1 = arith.constant 0 : index
    %0 = vector.load %arg1[%c0, %c0_0, %c0_1] : memref<1x64x196xf32, #tpu.memory_space<vmem>>, vector<1x64x196xf32>
    %1 = vector.shape_cast %0 : vector<1x64x196xf32> to vector<64x196xf32>
    %cst = arith.constant dense<0.000000e+00> : vector<64xf32>
    %2 = vector.multi_reduction <add>, %1, %cst [1] : vector<64x196xf32> to vector<64xf32>
    %3 = vector.shape_cast %2 : vector<64xf32> to vector<64x1xf32>
    %cst_2 = arith.constant 0.00510204071 : f32
    %4 = vector.broadcast %cst_2 : f32 to vector<64x1xf32>
    %5 = arith.mulf %3, %4 : vector<64x1xf32>
    %6 = vector.shape_cast %5 : vector<64x1xf32> to vector<64x1xf32>
    %7 = vector.broadcast %6 : vector<64x1xf32> to vector<64x128xf32>
    %c0_3 = arith.constant 0 : index
    %c0_4 = arith.constant 0 : index
    %8 = vector.load %arg2[%c0_3, %c0_4] : memref<8x64xf32, #tpu.memory_space<vmem>>, vector<8x64xf32>
    %cst_5 = arith.constant dense<0.000000e+00> : vector<8x128xf32>
    %9 = tpu.matmul %8, %7, %cst_5 {dimension_numbers = #tpu.dot_dimension_numbers<[1], [0], [0], [1], [0, 0, 1, 1], [], []>} : vector<8x64xf32>, vector<64x128xf32>, vector<8x128xf32> -> vector<8x128xf32>
    %cst_6 = arith.constant 0.000000e+00 : f32
    %10 = vector.broadcast %cst_6 : f32 to vector<8x128xf32>
    %11 = arith.maximumf %9, %10 : vector<8x128xf32>
    %c0_7 = arith.constant 0 : index
    %c0_8 = arith.constant 0 : index
    %12 = vector.load %arg3[%c0_7, %c0_8] : memref<64x8xf32, #tpu.memory_space<vmem>>, vector<64x8xf32>
    %cst_9 = arith.constant dense<0.000000e+00> : vector<64x128xf32>
    %13 = tpu.matmul %12, %11, %cst_9 {dimension_numbers = #tpu.dot_dimension_numbers<[1], [0], [0], [1], [0, 0, 1, 1], [], []>} : vector<64x8xf32>, vector<8x128xf32>, vector<64x128xf32> -> vector<64x128xf32>
    %14 = vector.extract_strided_slice %13 {offsets = [0, 0], sizes = [64, 1], strides = [1, 1]} : vector<64x128xf32> to vector<64x1xf32>
    %cst_10 = arith.constant 0.000000e+00 : f32
    %15 = vector.broadcast %cst_10 : f32 to vector<64x1xf32>
    %16 = arith.subf %15, %14 : vector<64x1xf32>
    %17 = math.exp %16 : vector<64x1xf32>
    %cst_11 = arith.constant 1.000000e+00 : f32
    %18 = vector.broadcast %cst_11 : f32 to vector<64x1xf32>
    %19 = arith.addf %18, %17 : vector<64x1xf32>
    %20 = tpu.reciprocal %19 {approx = true} : vector<64x1xf32> -> vector<64x1xf32>
    %c0_12 = arith.constant 0 : index
    %c0_13 = arith.constant 0 : index
    %c0_14 = arith.constant 0 : index
    %21 = vector.load %arg1[%c0_12, %c0_13, %c0_14] : memref<1x64x196xf32, #tpu.memory_space<vmem>>, vector<1x64x196xf32>
    %22 = vector.shape_cast %21 : vector<1x64x196xf32> to vector<64x196xf32>
    %23 = vector.broadcast %20 : vector<64x1xf32> to vector<64x196xf32>
    %24 = arith.mulf %22, %23 : vector<64x196xf32>
    %c0_15 = arith.constant 0 : index
    %c0_16 = arith.constant 0 : index
    %c0_17 = arith.constant 0 : index
    %25 = vector.load %arg4[%c0_15, %c0_16, %c0_17] : memref<1x64x196xf32, #tpu.memory_space<vmem>>, vector<1x64x196xf32>
    %26 = vector.shape_cast %25 : vector<1x64x196xf32> to vector<64x196xf32>
    %27 = vector.shape_cast %24 : vector<64x196xf32> to vector<1x64x196xf32>
    tpu.vector_store %arg4[%c0_15, %c0_16, %c0_17], %27 {strides = array<i32>} : memref<1x64x196xf32, #tpu.memory_space<vmem>>, vector<1x64x196xf32>,
    return
  }
  func.func @transform_0(%arg0: i32) -> (i32, i32, i32) {
    %c0_i32 = arith.constant 0 : i32
    %c0_i32_0 = arith.constant 0 : i32
    %c0_i32_1 = arith.constant 0 : i32
    return %arg0, %c0_i32, %c0_i32_0 : i32, i32, i32
  }
  func.func @transform_1(%arg0: i32) -> (i32, i32) {
    %c0_i32 = arith.constant 0 : i32
    %c0_i32_0 = arith.constant 0 : i32
    %c0_i32_1 = arith.constant 0 : i32
    return %c0_i32, %c0_i32_0 : i32, i32
  }
  func.func @transform_2(%arg0: i32) -> (i32, i32) {
    %c0_i32 = arith.constant 0 : i32
    %c0_i32_0 = arith.constant 0 : i32
    %c0_i32_1 = arith.constant 0 : i32
    return %c0_i32, %c0_i32_0 : i32, i32
  }
  func.func @transform_3(%arg0: i32) -> (i32, i32, i32) {
    %c0_i32 = arith.constant 0 : i32
    %c0_i32_0 = arith.constant 0 : i32
    %c0_i32_1 = arith.constant 0 : i32
    return %arg0, %c0_i32, %c0_i32_0 : i32, i32, i32
  }
}

</mosaic_0001>

<llo_original>
// kernel: se_module_pallas.1
$region0: #{se_module_pallas.1}
  #allocation0 [shape = 'u32[]', space=smem, size = 0x4, offset = 0x4, fixed_abs, tag = 'smem constant byte address 0x4 - core index']
  #allocation1 [shape = 'u32[144,128]{1,0:T(1,128)}', space=vmem, size = 0x12000, scoped, tag = 'internal scratch']
  %s0 = inlined_call_operand.vmem [shape: f32[2,64,196], index: 0, kind: input, shape index: {}]
  %s1 = inlined_call_operand.vmem [shape: f32[8,64], index: 1, kind: input, shape index: {}]
  %s2 = inlined_call_operand.vmem [shape: f32[64,8], index: 2, kind: input, shape index: {}]
  %s3 = inlined_call_operand.vmem [shape: f32[2,64,196], index: 3, kind: output, shape index: {}]
  %s4 = sld [smem:[#allocation0]]
  $region45: #{se_module_pallas.1} parent=0
    _
  %s6 = ssub.s32 1, %s4
  %s7 = scalar_select 0, %s6, %s4
  loop: start=0, step=1, limit=4
  $region2: #{se_module_pallas.1} parent=0 // loop_pre_header
    _
  $region3: #{se_module_pallas.1} parent=0 // loop_header
    %s9 = sphi 0, %s13
    %p10 = scmp.ge.s32.totalorder %s9, 4
    %s19 = sphi 0, %s21
    %s22 = sphi 0, %s19
    %s23 = sphi 0, %s22
    %s39 = sphi 0, %s23
    %s43 = sphi 0, %s43
    %s45 = sphi 0, %s43
    %s46 = sphi 0, %s45
    %s60 = sphi 0, %s46
    %s64 = sphi 0, %s64
    %s66 = sphi 0, %s64
    %s67 = sphi 0, %s66
    %s81 = sphi 0, %s67
    %s87 = sphi 0, %s89
    %s90 = sphi 0, %s87
    %s91 = sphi 0, %s90
    %s107 = sphi 0, %s91
  $region4: #{se_module_pallas.1} parent=0 // loop_header_branch
    %12 = sbr.rel (%p10) target = $region8
  $region5: #{se_module_pallas.1} parent=0 // loop_body
    %s14 = ssub.s32 %s9, 1
    %s15 = ssub.s32 %s9, 2
    %s16 = sadd.s32 %s9, 1
    %s17 = ssub.s32 %s9, %s16
    %p18 = scmp.eq.s32.totalorder %s17, 0
    %s20 = sadd.s32 %s19, 1
    %s21 = scalar_select %p18, %s19, %s20
    %p24 = pneg %p18
    %p25 = scmp.eq.s32.totalorder %s9, 1
    %p26 = por %p24, %p25
    %p27 = scmp.ne.s32.totalorder %s19, %s22
    %p28 = scmp.eq.s32.totalorder %s9, 0
    %p29 = por %p27, %p28
    %p30 = scmp.ne.s32.totalorder %s19, %s22
    %p31 = scmp.eq.s32.totalorder %s14, 1
    %p32 = por %p30, %p31
    %p33 = scmp.ne.s32.totalorder %s22, %s23
    %p34 = scmp.eq.s32.totalorder %s14, 0
    %p35 = por %p33, %p34
    %p36 = scmp.ne.s32.totalorder %s22, %s23
    %p37 = scmp.eq.s32.totalorder %s15, 1
    %p38 = por %p36, %p37
    %p40 = scmp.ne.s32.totalorder %s23, %s39
    %p41 = scmp.eq.s32.totalorder %s15, 0
    %p42 = por %p40, %p41
    %s44 = sadd.s32 %s43, 1
    %p47 = scmp.eq.s32.totalorder %s9, 1
    %p48 = scmp.ne.s32.totalorder %s43, %s45
    %p49 = scmp.eq.s32.totalorder %s9, 0
    %p50 = por %p48, %p49
    %p51 = scmp.ne.s32.totalorder %s43, %s45
    %p52 = scmp.eq.s32.totalorder %s14, 1
    %p53 = por %p51, %p52
    %p54 = scmp.ne.s32.totalorder %s45, %s46
    %p55 = scmp.eq.s32.totalorder %s14, 0
    %p56 = por %p54, %p55
    %p57 = scmp.ne.s32.totalorder %s45, %s46
    %p58 = scmp.eq.s32.totalorder %s15, 1
    %p59 = por %p57, %p58
    %p61 = scmp.ne.s32.totalorder %s46, %s60
    %p62 = scmp.eq.s32.totalorder %s15, 0
    %p63 = por %p61, %p62
    %s65 = sadd.s32 %s64, 1
    %p68 = scmp.eq.s32.totalorder %s9, 1
    %p69 = scmp.ne.s32.totalorder %s64, %s66
    %p70 = scmp.eq.s32.totalorder %s9, 0
    %p71 = por %p69, %p70
    %p72 = scmp.ne.s32.totalorder %s64, %s66
    %p73 = scmp.eq.s32.totalorder %s14, 1
    %p74 = por %p72, %p73
    %p75 = scmp.ne.s32.totalorder %s66, %s67
    %p76 = scmp.eq.s32.totalorder %s14, 0
    %p77 = por %p75, %p76
    %p78 = scmp.ne.s32.totalorder %s66, %s67
    %p79 = scmp.eq.s32.totalorder %s15, 1
    %p80 = por %p78, %p79
    %p82 = scmp.ne.s32.totalorder %s67, %s81
    %p83 = scmp.eq.s32.totalorder %s15, 0
    %p84 = por %p82, %p83
    %s85 = ssub.s32 %s9, %s16
    %p86 = scmp.eq.s32.totalorder %s85, 0
    %s88 = sadd.s32 %s87, 1
    %s89 = scalar_select %p86, %s87, %s88
    %p92 = pneg %p86
    %p93 = scmp.eq.s32.totalorder %s9, 1
    %p94 = por %p92, %p93
    %p95 = scmp.ne.s32.totalorder %s87, %s90
    %p96 = scmp.eq.s32.totalorder %s9, 0
    %p97 = por %p95, %p96
    %p98 = scmp.ne.s32.totalorder %s87, %s90
    %p99 = scmp.eq.s32.totalorder %s14, 1
    %p100 = por %p98, %p99
    %p101 = scmp.ne.s32.totalorder %s90, %s91
    %p102 = scmp.eq.s32.totalorder %s14, 0
    %p103 = por %p101, %p102
    %p104 = scmp.ne.s32.totalorder %s90, %s91
    %p105 = scmp.eq.s32.totalorder %s15, 1
    %p106 = por %p104, %p105
    %p108 = scmp.ne.s32.totalorder %s91, %s107
    %p109 = scmp.eq.s32.totalorder %s15, 0
    %p110 = por %p108, %p109
    %p111 = scmp.le.s32.totalorder 1, %s9
    %p112 = scmp.lt.s32.totalorder %s9, 3
    %p113 = pnand %p111, %p112
    %p114 = pneg %p113
    // Predicated region
    $region9: #{se_module_pallas.1} parent=5 // pred_check
      _
    $region10: #{se_module_pallas.1} parent=5 // pred_check_branch
      %116 = sbr.rel (%p113) target = $region12
    $region11: #{se_module_pallas.1} parent=5 // pred_region
      %s117 = ssub.s32 %s9, 1
      // Predicated region
      $region13: #{se_module_pallas.1} parent=11 // pred_check
        %p118 = pneg %p56
      $region14: #{se_module_pallas.1} parent=11 // pred_check_branch
        %120 = sbr.rel (%p118) target = $region16
      $region15: #{se_module_pallas.1} parent=11 // pred_region
        _
      $region16: #{se_module_pallas.1} parent=11 // pred_fallthru
        _
      // Predicated region
      $region17: #{se_module_pallas.1} parent=11 // pred_check
        %p121 = pneg %p77
      $region18: #{se_module_pallas.1} parent=11 // pred_check_branch
        %123 = sbr.rel (%p121) target = $region20
      $region19: #{se_module_pallas.1} parent=11 // pred_region
        _
      $region20: #{se_module_pallas.1} parent=11 // pred_fallthru
        _
    $region12: #{se_module_pallas.1} parent=5 // pred_fallthru
      _
    %p124 = scmp.lt.s32.totalorder %s9, 2
    // Predicated region
    $region21: #{se_module_pallas.1} parent=5 // pred_check
      %p125 = pneg %p124
    $region22: #{se_module_pallas.1} parent=5 // pred_check_branch
      %127 = sbr.rel (%p125) target = $region24
    $region23: #{se_module_pallas.1} parent=5 // pred_region
      // Predicated region
      $region25: #{se_module_pallas.1} parent=23 // pred_check
        %p128 = pneg %p29
      $region26: #{se_module_pallas.1} parent=23 // pred_check_branch
        %130 = sbr.rel (%p128) target = $region28
      $region27: #{se_module_pallas.1} parent=23 // pred_region
        %p131 = scmp.lt.s32.totalorder %s9, 1
        %s132 = scalar_select %p131, %s9, 1
        %s133 = smul.addr %s132, 16
        %s134 = smul.addr %s133, 8
        %s135 = scalar_lea.vmem %s0, %s134
      $region28: #{se_module_pallas.1} parent=23 // pred_fallthru
        _
    $region24: #{se_module_pallas.1} parent=5 // pred_fallthru
      _
    %p136 = scmp.le.s32.totalorder 1, %s9
    %p137 = scmp.lt.s32.totalorder %s9, 3
    %p138 = pnand %p136, %p137
    %p139 = pneg %p138
    // Predicated region
    $region29: #{se_module_pallas.1} parent=5 // pred_check
      _
    $region30: #{se_module_pallas.1} parent=5 // pred_check_branch
      %141 = sbr.rel (%p138) target = $region32
    $region31: #{se_module_pallas.1} parent=5 // pred_region
      %s142 = ssub.s32 %s9, 1
      %p143 = scmp.lt.s32.totalorder %s14, 1
      %s144 = scalar_select %p143, %s14, 1
      %s145 = smul.addr %s144, 16
      %s146 = smul.addr %s145, 8
      %s147 = scalar_lea.vmem %s0, %s146
      %p148 = pneg %p35
      %p149 = pneg %p32
      %p150 = pneg %p56
      %p151 = pneg %p53
      %p152 = pneg %p77
      %p153 = pneg %p74
      %p154 = pneg %p103
      %p155 = pneg %p100
      %p156 = scmp.lt.s32.totalorder %s14, 1
      %s157 = scalar_select %p156, %s14, 1
      %s158 = smul.addr %s157, 16
      %s159 = smul.addr %s158, 8
      %s160 = scalar_lea.vmem %s3, %s159
      %p161 = scmp.lt.s32.totalorder %s14, 1
      %s162 = scalar_select %p161, %s14, 1
      %s163 = smul.addr %s162, 16
      %s164 = smul.addr %s163, 8
      %s165 = scalar_lea.vmem %s0, %s164
      %p166 = scmp.lt.s32.totalorder %s14, 1
      %s167 = scalar_select %p166, %s14, 1
      %s168 = smul.addr %s167, 16
      %s169 = smul.addr %s168, 8
      %s170 = scalar_lea.vmem %s3, %s169
      %v171 = vld [vmem:[%s165] sm:$0xff]
      %v172 = vld [vmem:[%s165 + $0x8] sm:$0xff]
      %v173 = vld [vmem:[%s165 + $0x10] sm:$0xff]
      %v174 = vld [vmem:[%s165 + $0x18] sm:$0xff]
      %v175 = vld [vmem:[%s165 + $0x20] sm:$0xff]
      %v176 = vld [vmem:[%s165 + $0x28] sm:$0xff]
      %v177 = vld [vmem:[%s165 + $0x30] sm:$0xff]
      %v178 = vld [vmem:[%s165 + $0x38] sm:$0xff]
      %v179 = vld [vmem:[%s165 + $0x40] sm:$0xff]
      %v180 = vld [vmem:[%s165 + $0x48] sm:$0xff]
      %v181 = vld [vmem:[%s165 + $0x50] sm:$0xff]
      %v182 = vld [vmem:[%s165 + $0x58] sm:$0xff]
      %v183 = vld [vmem:[%s165 + $0x60] sm:$0xff]
      %v184 = vld [vmem:[%s165 + $0x68] sm:$0xff]
      %v185 = vld [vmem:[%s165 + $0x70] sm:$0xff]
      %v186 = vld [vmem:[%s165 + $0x78] sm:$0xff]
      %vm187 = vcmask 556032
      %v188 = vsel %vm187, %v172, 0.0
      %v189 = vadd.f32 %v171, %v188
      %190 = vadd.xlane.f32.xlu0 %v189
      %v191 = vpop.xlane.xlu0 %190
      %v192 = vsel %vm187, %v174, 0.0
      %v193 = vadd.f32 %v173, %v192
      %194 = vadd.xlane.f32.xlu0 %v193
      %v195 = vpop.xlane.xlu0 %194
      %v196 = vsel %vm187, %v176, 0.0
      %v197 = vadd.f32 %v175, %v196
      %198 = vadd.xlane.f32.xlu0 %v197
      %v199 = vpop.xlane.xlu0 %198
      %v200 = vsel %vm187, %v178, 0.0
      %v201 = vadd.f32 %v177, %v200
      %202 = vadd.xlane.f32.xlu0 %v201
      %v203 = vpop.xlane.xlu0 %202
      %v204 = vsel %vm187, %v180, 0.0
      %v205 = vadd.f32 %v179, %v204
      %206 = vadd.xlane.f32.xlu0 %v205
      %v207 = vpop.xlane.xlu0 %206
      %v208 = vsel %vm187, %v182, 0.0
      %v209 = vadd.f32 %v181, %v208
      %210 = vadd.xlane.f32.xlu0 %v209
      %v211 = vpop.xlane.xlu0 %210
      %v212 = vsel %vm187, %v184, 0.0
      %v213 = vadd.f32 %v183, %v212
      %214 = vadd.xlane.f32.xlu0 %v213
      %v215 = vpop.xlane.xlu0 %214
      %v216 = vsel %vm187, %v186, 0.0
      %v217 = vadd.f32 %v185, %v216
      %218 = vadd.xlane.f32.xlu0 %v217
      %v219 = vpop.xlane.xlu0 %218
      %v220 = vmul.f32 %v191, 0.0051020407
      %v221 = vmul.f32 %v195, 0.0051020407
      %v222 = vmul.f32 %v199, 0.0051020407
      %v223 = vmul.f32 %v203, 0.0051020407
      %v224 = vmul.f32 %v207, 0.0051020407
      %v225 = vmul.f32 %v211, 0.0051020407
      %v226 = vmul.f32 %v215, 0.0051020407
      %v227 = vmul.f32 %v219, 0.0051020407
      %v228 = vld [vmem:[%s1] sm:$0xff]
      %vm229 = vcmask 523264
      %v231 = vsel %vm229, %v228, 0
      %233 = vmatprep.subr.mxu0 0.0
      %234 = vmatpush1.msra.mxu0 %v220
      %235 = vmatprep.subr.mxu0 0.0
      %236 = vmatpush1.msra.mxu0 %v221
      %237 = vmatprep.subr.mxu0 0.0
      %238 = vmatpush1.msra.mxu0 %v222
      %239 = vmatprep.subr.mxu0 0.0
      %240 = vmatpush1.msra.mxu0 %v223
      %241 = vmatprep.subr.mxu0 0.0
      %242 = vmatpush1.msra.mxu0 %v224
      %243 = vmatprep.subr.mxu0 0.0
      %244 = vmatpush1.msra.mxu0 %v225
      %245 = vmatprep.subr.mxu0 0.0
      %246 = vmatpush1.msra.mxu0 %v226
      %247 = vmatprep.subr.mxu0 0.0
      %248 = vmatpush1.msra.mxu0 %v227
      %249 = vmatprep.subr.mxu0 0.0
      %250 = vmatpush1.msra.mxu0 0.0
      %251 = vmatprep.subr.mxu0 0.0
      %252 = vmatpush1.msra.mxu0 0.0
      %253 = vmatprep.subr.mxu0 0.0
      %254 = vmatpush1.msra.mxu0 0.0
      %255 = vmatprep.subr.mxu0 0.0
      %256 = vmatpush1.msra.mxu0 0.0
      %257 = vmatprep.subr.mxu0 0.0
      %258 = vmatpush1.msra.mxu0 0.0
      %259 = vmatprep.subr.mxu0 0.0
      %260 = vmatpush1.msra.mxu0 0.0
      %261 = vmatprep.subr.mxu0 0.0
      %262 = vmatpush1.msra.mxu0 0.0
      %263 = vmatprep.subr.mxu0 0.0
      %264 = vmatpush1.msra.mxu0 0.0
      %265 = vmatprep.subr.mxu0 0.0
      %266 = vmatpush1.msra.mxu0 0.0
      %267 = vmatprep.subr.mxu0 0.0
      %268 = vmatpush1.msra.mxu0 0.0
      %269 = vmatprep.subr.mxu0 0.0
      %270 = vmatpush1.msra.mxu0 0.0
      %271 = vmatprep.subr.mxu0 0.0
      %272 = vmatpush1.msra.mxu0 0.0
      %273 = vmatprep.subr.mxu0 0.0
      %274 = vmatpush1.msra.mxu0 0.0
      %275 = vmatprep.subr.mxu0 0.0
      %276 = vmatpush1.msra.mxu0 0.0
      %277 = vmatprep.subr.mxu0 0.0
      %278 = vmatpush1.msra.mxu0 0.0
      %279 = vmatprep.subr.mxu0 0.0
      %280 = vmatpush1.msra.mxu0 0.0
      %281 = vmatprep.subr.mxu0 0.0
      %282 = vmatpush1.msra.mxu0 0.0
      %283 = vmatprep.subr.mxu0 0.0
      %284 = vmatpush1.msra.mxu0 0.0
      %285 = vmatprep.subr.mxu0 0.0
      %286 = vmatpush1.msra.mxu0 0.0
      %287 = vmatprep.subr.mxu0 0.0
      %288 = vmatpush1.msra.mxu0 0.0
      %289 = vmatprep.subr.mxu0 0.0
      %290 = vmatpush1.msra.mxu0 0.0
      %291 = vmatprep.subr.mxu0 0.0
      %292 = vmatpush1.msra.mxu0 0.0
      %293 = vmatprep.subr.mxu0 0.0
      %294 = vmatpush1.msra.mxu0 0.0
      %295 = vmatprep.subr.mxu0 0.0
      %296 = vmatpush1.msra.mxu0 0.0
      %297 = vmatprep.mubr.f32.mxu0 0.0
      %298 = vmatmul.mubr.f32.gmra.mrb[0].mxu0 %v231
      %v299 = vpop.f32.mrb[0].mxu0
      %v300 = vadd.f32 0.0, %v299
      %v301 = vpop.f32.mrb[0].mxu0
      %302 = vdwg.mxu0
      %v303 = vmax.f32 %v300, 0.0
      %v304 = vld [vmem:[%s2] sm:$0xff]
      %v305 = vld [vmem:[%s2 + $0x8] sm:$0xff]
      %v306 = vld [vmem:[%s2 + $0x10] sm:$0xff]
      %v307 = vld [vmem:[%s2 + $0x18] sm:$0xff]
      %v308 = vld [vmem:[%s2 + $0x20] sm:$0xff]
      %v309 = vld [vmem:[%s2 + $0x28] sm:$0xff]
      %v310 = vld [vmem:[%s2 + $0x30] sm:$0xff]
      %v311 = vld [vmem:[%s2 + $0x38] sm:$0xff]
      %vm312 = vcmask 64512
      %v314 = vsel %vm312, %v304, 0
      %v317 = vsel %vm312, %v305, 0
      %v320 = vsel %vm312, %v306, 0
      %v323 = vsel %vm312, %v307, 0
      %v326 = vsel %vm312, %v308, 0
      %v329 = vsel %vm312, %v309, 0
      %v332 = vsel %vm312, %v310, 0
      %v335 = vsel %vm312, %v311, 0
      %337 = vmatprep.subr.mxu0 0.0
      %338 = vmatpush1.msra.mxu0 %v303
      %339 = vmatprep.subr.mxu0 0.0
      %340 = vmatpush1.msra.mxu0 0.0
      %341 = vmatprep.subr.mxu0 0.0
      %342 = vmatpush1.msra.mxu0 0.0
      %343 = vmatprep.subr.mxu0 0.0
      %344 = vmatpush1.msra.mxu0 0.0
      %345 = vmatprep.subr.mxu0 0.0
      %346 = vmatpush1.msra.mxu0 0.0
      %347 = vmatprep.subr.mxu0 0.0
      %348 = vmatpush1.msra.mxu0 0.0
      %349 = vmatprep.subr.mxu0 0.0
      %350 = vmatpush1.msra.mxu0 0.0
      %351 = vmatprep.subr.mxu0 0.0
      %352 = vmatpush1.msra.mxu0 0.0
      %353 = vmatprep.subr.mxu0 0.0
      %354 = vmatpush1.msra.mxu0 0.0
      %355 = vmatprep.subr.mxu0 0.0
      %356 = vmatpush1.msra.mxu0 0.0
      %357 = vmatprep.subr.mxu0 0.0
      %358 = vmatpush1.msra.mxu0 0.0
      %359 = vmatprep.subr.mxu0 0.0
      %360 = vmatpush1.msra.mxu0 0.0
      %361 = vmatprep.subr.mxu0 0.0
      %362 = vmatpush1.msra.mxu0 0.0
      %363 = vmatprep.subr.mxu0 0.0
      %364 = vmatpush1.msra.mxu0 0.0
      %365 = vmatprep.subr.mxu0 0.0
      %366 = vmatpush1.msra.mxu0 0.0
      %367 = vmatprep.subr.mxu0 0.0
      %368 = vmatpush1.msra.mxu0 0.0
      %369 = vmatprep.subr.mxu0 0.0
      %370 = vmatpush1.msra.mxu0 0.0
      %371 = vmatprep.subr.mxu0 0.0
      %372 = vmatpush1.msra.mxu0 0.0
      %373 = vmatprep.subr.mxu0 0.0
      %374 = vmatpush1.msra.mxu0 0.0
      %375 = vmatprep.subr.mxu0 0.0
      %376 = vmatpush1.msra.mxu0 0.0
      %377 = vmatprep.subr.mxu0 0.0
      %378 = vmatpush1.msra.mxu0 0.0
      %379 = vmatprep.subr.mxu0 0.0
      %380 = vmatpush1.msra.mxu0 0.0
      %381 = vmatprep.subr.mxu0 0.0
      %382 = vmatpush1.msra.mxu0 0.0
      %383 = vmatprep.subr.mxu0 0.0
      %384 = vmatpush1.msra.mxu0 0.0
      %385 = vmatprep.subr.mxu0 0.0
      %386 = vmatpush1.msra.mxu0 0.0
      %387 = vmatprep.subr.mxu0 0.0
      %388 = vmatpush1.msra.mxu0 0.0
      %389 = vmatprep.subr.mxu0 0.0
      %390 = vmatpush1.msra.mxu0 0.0
      %391 = vmatprep.subr.mxu0 0.0
      %392 = vmatpush1.msra.mxu0 0.0
      %393 = vmatprep.subr.mxu0 0.0
      %394 = vmatpush1.msra.mxu0 0.0
      %395 = vmatprep.subr.mxu0 0.0
      %396 = vmatpush1.msra.mxu0 0.0
      %397 = vmatprep.subr.mxu0 0.0
      %398 = vmatpush1.msra.mxu0 0.0
      %399 = vmatprep.subr.mxu0 0.0
      %400 = vmatpush1.msra.mxu0 0.0
      %401 = vmatprep.mubr.f32.mxu0 0.0
      %402 = vmatmul.mubr.f32.gmra.mrb[0].mxu0 %v314
      %v403 = vpop.f32.mrb[0].mxu0
      %v404 = vadd.f32 0.0, %v403
      %v405 = vpop.f32.mrb[0].mxu0
      %406 = vmatprep.mubr.f32.mxu0 0.0
      %407 = vmatmul.mubr.f32.gmra.mrb[0].mxu0 %v317
      %v408 = vpop.f32.mrb[0].mxu0
      %v409 = vadd.f32 0.0, %v408
      %v410 = vpop.f32.mrb[0].mxu0
      %411 = vmatprep.mubr.f32.mxu0 0.0
      %412 = vmatmul.mubr.f32.gmra.mrb[0].mxu0 %v320
      %v413 = vpop.f32.mrb[0].mxu0
      %v414 = vadd.f32 0.0, %v413
      %v415 = vpop.f32.mrb[0].mxu0
      %416 = vmatprep.mubr.f32.mxu0 0.0
      %417 = vmatmul.mubr.f32.gmra.mrb[0].mxu0 %v323
      %v418 = vpop.f32.mrb[0].mxu0
      %v419 = vadd.f32 0.0, %v418
      %v420 = vpop.f32.mrb[0].mxu0
      %421 = vmatprep.mubr.f32.mxu0 0.0
      %422 = vmatmul.mubr.f32.gmra.mrb[0].mxu0 %v326
      %v423 = vpop.f32.mrb[0].mxu0
      %v424 = vadd.f32 0.0, %v423
      %v425 = vpop.f32.mrb[0].mxu0
      %426 = vmatprep.mubr.f32.mxu0 0.0
      %427 = vmatmul.mubr.f32.gmra.mrb[0].mxu0 %v329
      %v428 = vpop.f32.mrb[0].mxu0
      %v429 = vadd.f32 0.0, %v428
      %v430 = vpop.f32.mrb[0].mxu0
      %431 = vmatprep.mubr.f32.mxu0 0.0
      %432 = vmatmul.mubr.f32.gmra.mrb[0].mxu0 %v332
      %v433 = vpop.f32.mrb[0].mxu0
      %v434 = vadd.f32 0.0, %v433
      %v435 = vpop.f32.mrb[0].mxu0
      %436 = vmatprep.mubr.f32.mxu0 0.0
      %437 = vmatmul.mubr.f32.gmra.mrb[0].mxu0 %v335
      %v438 = vpop.f32.mrb[0].mxu0
      %v439 = vadd.f32 0.0, %v438
      %v440 = vpop.f32.mrb[0].mxu0
      %441 = vdwg.mxu0
      %v442 = vsub.f32 0.0, %v404
      %v443 = vsub.f32 0.0, %v409
      %v444 = vsub.f32 0.0, %v414
      %v445 = vsub.f32 0.0, %v419
      %v446 = vsub.f32 0.0, %v424
      %v447 = vsub.f32 0.0, %v429
      %v448 = vsub.f32 0.0, %v434
      %v449 = vsub.f32 0.0, %v439
      %v450 = vmul.f32 %v442, 1.442695
      %v451 = vpow.pop %v450
      %v452 = vmul.f32 %v443, 1.442695
      %v453 = vpow.pop %v452
      %v454 = vmul.f32 %v444, 1.442695
      %v455 = vpow.pop %v454
      %v456 = vmul.f32 %v445, 1.442695
      %v457 = vpow.pop %v456
      %v458 = vmul.f32 %v446, 1.442695
      %v459 = vpow.pop %v458
      %v460 = vmul.f32 %v447, 1.442695
      %v461 = vpow.pop %v460
      %v462 = vmul.f32 %v448, 1.442695
      %v463 = vpow.pop %v462
      %v464 = vmul.f32 %v449, 1.442695
      %v465 = vpow.pop %v464
      %v466 = vadd.f32 %v451, 1.0
      %v467 = vadd.f32 %v453, 1.0
      %v468 = vadd.f32 %v455, 1.0
      %v469 = vadd.f32 %v457, 1.0
      %v470 = vadd.f32 %v459, 1.0
      %v471 = vadd.f32 %v461, 1.0
      %v472 = vadd.f32 %v463, 1.0
      %v473 = vadd.f32 %v465, 1.0
      %v474 = vrcp.pop %v466
      %v475 = vrcp.pop %v467
      %v476 = vrcp.pop %v468
      %v477 = vrcp.pop %v469
      %v478 = vrcp.pop %v470
      %v479 = vrcp.pop %v471
      %v480 = vrcp.pop %v472
      %v481 = vrcp.pop %v473
      %483 = vset.pattern.permute.xlu0 0
      %484 = vperm.xlu0 %483, %v474
      %v485 = vpop.permute.xlu0 %484
      %488 = vset.pattern.permute.xlu0 0
      %489 = vperm.xlu0 %488, %v475
      %v490 = vpop.permute.xlu0 %489
      %493 = vset.pattern.permute.xlu0 0
      %494 = vperm.xlu0 %493, %v476
      %v495 = vpop.permute.xlu0 %494
      %498 = vset.pattern.permute.xlu0 0
      %499 = vperm.xlu0 %498, %v477
      %v500 = vpop.permute.xlu0 %499
      %503 = vset.pattern.permute.xlu0 0
      %504 = vperm.xlu0 %503, %v478
      %v505 = vpop.permute.xlu0 %504
      %508 = vset.pattern.permute.xlu0 0
      %509 = vperm.xlu0 %508, %v479
      %v510 = vpop.permute.xlu0 %509
      %513 = vset.pattern.permute.xlu0 0
      %514 = vperm.xlu0 %513, %v480
      %v515 = vpop.permute.xlu0 %514
      %518 = vset.pattern.permute.xlu0 0
      %519 = vperm.xlu0 %518, %v481
      %v520 = vpop.permute.xlu0 %519
      %v522 = vmul.f32 %v171, %v485
      %v523 = vmul.f32 %v172, %v485
      %v524 = vmul.f32 %v173, %v490
      %v525 = vmul.f32 %v174, %v490
      %v526 = vmul.f32 %v175, %v495
      %v527 = vmul.f32 %v176, %v495
      %v528 = vmul.f32 %v177, %v500
      %v529 = vmul.f32 %v178, %v500
      %v530 = vmul.f32 %v179, %v505
      %v531 = vmul.f32 %v180, %v505
      %v532 = vmul.f32 %v181, %v510
      %v533 = vmul.f32 %v182, %v510
      %v534 = vmul.f32 %v183, %v515
      %v535 = vmul.f32 %v184, %v515
      %v536 = vmul.f32 %v185, %v520
      %v537 = vmul.f32 %v186, %v520
      %538 = vst [vmem:[%s170] sm:$0xff] %v522
      %539 = vst.msk [vmem:[%s170 + $0x8] sm:$0xff] %vm187, %v523
      %540 = vst [vmem:[%s170 + $0x10] sm:$0xff] %v524
      %541 = vst.msk [vmem:[%s170 + $0x18] sm:$0xff] %vm187, %v525
      %542 = vst [vmem:[%s170 + $0x20] sm:$0xff] %v526
      %543 = vst.msk [vmem:[%s170 + $0x28] sm:$0xff] %vm187, %v527
      %544 = vst [vmem:[%s170 + $0x30] sm:$0xff] %v528
      %545 = vst.msk [vmem:[%s170 + $0x38] sm:$0xff] %vm187, %v529
      %546 = vst [vmem:[%s170 + $0x40] sm:$0xff] %v530
      %547 = vst.msk [vmem:[%s170 + $0x48] sm:$0xff] %vm187, %v531
      %548 = vst [vmem:[%s170 + $0x50] sm:$0xff] %v532
      %549 = vst.msk [vmem:[%s170 + $0x58] sm:$0xff] %vm187, %v533
      %550 = vst [vmem:[%s170 + $0x60] sm:$0xff] %v534
      %551 = vst.msk [vmem:[%s170 + $0x68] sm:$0xff] %vm187, %v535
      %552 = vst [vmem:[%s170 + $0x70] sm:$0xff] %v536
      %553 = vst.msk [vmem:[%s170 + $0x78] sm:$0xff] %vm187, %v537
      %p554 = scmp.lt.s32.totalorder %s14, 1
      %s555 = scalar_select %p554, %s14, 1
      %s556 = smul.addr %s555, 16
      %s557 = smul.addr %s556, 8
      %s558 = scalar_lea.vmem %s3, %s557
      // Predicated region
      $region33: #{se_module_pallas.1} parent=31 // pred_check
        %p559 = pneg %p100
      $region34: #{se_module_pallas.1} parent=31 // pred_check_branch
        %561 = sbr.rel (%p559) target = $region36
      $region35: #{se_module_pallas.1} parent=31 // pred_region
        _
      $region36: #{se_module_pallas.1} parent=31 // pred_fallthru
        _
    $region32: #{se_module_pallas.1} parent=5 // pred_fallthru
      _
    %p562 = scmp.le.s32.totalorder 2, %s9
    // Predicated region
    $region37: #{se_module_pallas.1} parent=5 // pred_check
      %p563 = pneg %p562
    $region38: #{se_module_pallas.1} parent=5 // pred_check_branch
      %565 = sbr.rel (%p563) target = $region40
    $region39: #{se_module_pallas.1} parent=5 // pred_region
      %s566 = ssub.s32 %s9, 2
      // Predicated region
      $region41: #{se_module_pallas.1} parent=39 // pred_check
        %p567 = pneg %p106
      $region42: #{se_module_pallas.1} parent=39 // pred_check_branch
        %569 = sbr.rel (%p567) target = $region44
      $region43: #{se_module_pallas.1} parent=39 // pred_region
        %p570 = scmp.lt.s32.totalorder %s15, 1
        %s571 = scalar_select %p570, %s15, 1
        %s572 = smul.addr %s571, 16
        %s573 = smul.addr %s572, 8
        %s574 = scalar_lea.vmem %s3, %s573
      $region44: #{se_module_pallas.1} parent=39 // pred_fallthru
        _
    $region40: #{se_module_pallas.1} parent=5 // pred_fallthru
      _
  $region6: #{se_module_pallas.1} parent=0 // loop_footer
    %s13 = sadd.s32 1, %s9
  $region7: #{se_module_pallas.1} parent=0 // loop_footer_branch
    %8 = sbr.rel target = $region3
  $region8: #{se_module_pallas.1} parent=0 // loop_exit
    _

</llo_original>
